<compile_context>
chip_gen: v6e
topology: v6e:2x2x1
jax: 0.10.0
libtpu: 0.0.40
codegen_flags: <defaults>
</compile_context>

<pallas_src>
import functools

import jax
import jax.numpy as jnp
from jax import lax
from jax.experimental import pallas as pl
from jax.experimental.pallas import tpu as pltpu

EPS = 1e-12


# --------------------------------------------------------------------------
# Fused encoder + NetVLAD kernel. One grid step = (batch b, pixel-tile t).
# All tensors are channel-major: (channels, pixels_in_tile).
# --------------------------------------------------------------------------
def bevplace_kernel(patches_ref,   # (1, KK, TN)   bf16  im2col taps, tap-major
                    w1_ref,        # (C1P, KK)     bf16
                    b1_ref,        # (C1P, 1)      f32
                    w2_ref,        # (C2P, C1P)    bf16
                    b2_ref,        # (C2P, 1)      f32
                    vw_ref,        # (K, C2P)      bf16  NetVLAD 1x1 conv weight
                    vb_ref,        # (K, 1)        f32
                    cent_ref,      # (K, C2P)      f32   centroids (zero-padded)
                    out_ref,       # (1, K, C2P)   f32
                    agg_ref,       # scratch (K, C2P) f32  sum_n a[k,n]*xn[c,n]
                    asum_ref):     # scratch (K, 1)   f32  sum_n a[k,n]
    t = pl.program_id(1)

    @pl.when(t == 0)
    def _init():
        agg_ref[...] = jnp.zeros_like(agg_ref)
        asum_ref[...] = jnp.zeros_like(asum_ref)

    p = patches_ref[0]                                             # (KK, TN)

    # ---- encoder: relu(W1 @ patches + b1); W2 @ h + b2 (MXU, f32 accum) ----
    h = jnp.dot(w1_ref[...], p, preferred_element_type=jnp.float32) + b1_ref[...]
    h = jnp.maximum(h, 0.0).astype(jnp.bfloat16)                   # (C1P, TN)
    f = jnp.dot(w2_ref[...], h, preferred_element_type=jnp.float32) + b2_ref[...]
    # f: (C2P, TN) f32 local features (channels on sublanes, pixels on lanes)

    # ---- NetVLAD: per-descriptor L2 norm (over channels) ----
    inv_n = lax.rsqrt(jnp.sum(f * f, axis=0, keepdims=True) + EPS)  # (1, TN)
    xn_b = (f * inv_n).astype(jnp.bfloat16)                         # (C2P, TN)

    # soft assignment: 1x1 conv + softmax over clusters (sublane axis)
    logits = jnp.dot(vw_ref[...], xn_b,
                     preferred_element_type=jnp.float32) + vb_ref[...]   # (K, TN)
    m = jnp.max(logits, axis=0, keepdims=True)
    e = jnp.exp(logits - m)
    a = e * pl.reciprocal(jnp.sum(e, axis=0, keepdims=True), approx=True)  # (K, TN)

    # residual aggregation for this pixel tile (centroid term deferred to finalize):
    #   agg[k, c] += sum_n a[k, n] * xn[c, n]   (contract over pixels / lanes)
    agg_ref[...] += lax.dot_general(a.astype(jnp.bfloat16), xn_b,
                                    (((1,), (1,)), ((), ())),
                                    preferred_element_type=jnp.float32)   # (K, C2P)
    asum_ref[...] += jnp.sum(a, axis=1, keepdims=True)                    # (K, 1)

    # ---- finalize on the last pixel tile: centroids + intra + global L2 norm ----
    @pl.when(t == pl.num_programs(1) - 1)
    def _finalize():
        v = agg_ref[...] - cent_ref[...] * asum_ref[...]
        v = v * lax.rsqrt(jnp.sum(v * v, axis=-1, keepdims=True) + EPS)
        v = v * lax.rsqrt(jnp.sum(v * v, axis=(0, 1), keepdims=True) + EPS)
        out_ref[0] = v


def bevplace_pallas(patches, w1, b1, w2, b2, vw, vb, cent, *, tile_n):
    B, KK, N = patches.shape
    C1P = w1.shape[0]
    C2P = w2.shape[0]
    K = vw.shape[0]
    num_tiles = N // tile_n

    return pl.pallas_call(
        bevplace_kernel,
        out_shape=jax.ShapeDtypeStruct((B, K, C2P), jnp.float32),
        grid=(B, num_tiles),
        in_specs=[
            pl.BlockSpec((1, KK, tile_n), lambda b, t: (b, 0, t)),
            pl.BlockSpec((C1P, KK), lambda b, t: (0, 0)),
            pl.BlockSpec((C1P, 1), lambda b, t: (0, 0)),
            pl.BlockSpec((C2P, C1P), lambda b, t: (0, 0)),
            pl.BlockSpec((C2P, 1), lambda b, t: (0, 0)),
            pl.BlockSpec((K, C2P), lambda b, t: (0, 0)),
            pl.BlockSpec((K, 1), lambda b, t: (0, 0)),
            pl.BlockSpec((K, C2P), lambda b, t: (0, 0)),
        ],
        out_specs=pl.BlockSpec((1, K, C2P), lambda b, t: (b, 0, 0)),
        scratch_shapes=[pltpu.VMEM((K, C2P), jnp.float32),
                        pltpu.VMEM((K, 1), jnp.float32)],
        compiler_params=pltpu.CompilerParams(
            dimension_semantics=("parallel", "arbitrary"),
        ),
    )(patches, w1, b1, w2, b2, vw, vb, cent)


# --------------------------------------------------------------------------
# Wrapper glue: im2col (tap-major), zero-padding to MXU-friendly channel dims,
# bf16 casts, and the BEVPlace forward.
# --------------------------------------------------------------------------
def im2col_taps(x):
    # x: (B, Cin, H, W) NCHW, 3x3, padding=1, stride=1 -> (B, Cin*9, H*W)
    B, Cin, H, W = x.shape
    xp = jnp.pad(x, ((0, 0), (0, 0), (1, 1), (1, 1)))
    taps = [xp[:, :, dy:dy + H, dx:dx + W] for dy in range(3) for dx in range(3)]
    p = jnp.stack(taps, axis=2)                     # (B, Cin, 9, H, W)
    return p.reshape(B, Cin * 9, H * W)


def _pad_to(a, axis, size):
    pad = size - a.shape[axis]
    if pad <= 0:
        return a
    widths = [(0, 0)] * a.ndim
    widths[axis] = (0, pad)
    return jnp.pad(a, widths)


def _round_up(v, m):
    return ((v + m - 1) // m) * m


def _pick_tile_n(n, pref=512):
    # Largest multiple-of-128 divisor of n, capped at `pref`; fall back to n.
    best = None
    t = 128
    while t <= min(n, pref):
        if n % t == 0:
            best = t
        t += 128
    return best if best is not None else n


def bevplace_forward(x, params, *, tile_n=None):
    B, Cin, H, W = x.shape
    N = H * W
    if tile_n is None:
        tile_n = _pick_tile_n(N)
    tile_n = min(tile_n, N)
    assert N % tile_n == 0, "pixel count must be divisible by tile_n"

    C1 = params["w1"].shape[1]
    C2 = params["w2"].shape[1]
    K = params["vlad_w"].shape[0]
    C1P = _round_up(max(C1, 128), 128)   # pad channel dims to full MXU/lane width
    C2P = _round_up(max(C2, 128), 128)

    # im2col taps, tap-major (DMA-friendly: pixels on the lane axis), bf16.
    patches = im2col_taps(x).astype(jnp.bfloat16)                       # (B, KK, N)

    # Kernel-layout params: channel-major, zero-padded (exactly preserves math).
    w1 = _pad_to(params["w1"].T, 0, C1P).astype(jnp.bfloat16)           # (C1P, KK)
    b1 = _pad_to(params["b1"].reshape(C1, 1), 0, C1P)                   # (C1P, 1)
    w2 = _pad_to(_pad_to(params["w2"].T, 0, C2P), 1, C1P).astype(jnp.bfloat16)
    b2 = _pad_to(params["b2"].reshape(C2, 1), 0, C2P)                   # (C2P, 1)
    vw = _pad_to(params["vlad_w"], 1, C2P).astype(jnp.bfloat16)         # (K, C2P)
    vb = params["vlad_b"].reshape(K, 1)                                 # (K, 1)
    cent = _pad_to(params["centroids"], 1, C2P)                         # (K, C2P)

    vlad = bevplace_pallas(patches, w1, b1, w2, b2, vw, vb, cent, tile_n=tile_n)
    # Padded channels are exactly zero; drop them and flatten to (B, K*C2).
    return vlad[:, :, :C2].reshape(B, K * C2)


# --------------------------------------------------------------------------
# Pure-JAX reference implementing the same math (same bf16/f32 decisions).
# --------------------------------------------------------------------------
def bevplace_reference(x, params):
    bf = lambda a: a.astype(jnp.bfloat16).astype(jnp.float32)
    B = x.shape[0]
    K, C2 = params["centroids"].shape

    p = bf(im2col_taps(x)).transpose(0, 2, 1)                       # (B, N, KK)
    h = jnp.maximum(p @ bf(params["w1"]) + params["b1"], 0.0)       # (B, N, C1)
    feats = bf(h) @ bf(params["w2"]) + params["b2"]                 # (B, N, C2)

    xn = feats * lax.rsqrt(jnp.sum(feats * feats, axis=-1, keepdims=True) + EPS)
    xnb = bf(xn)
    logits = jnp.einsum("bnc,kc->bnk", xnb, bf(params["vlad_w"])) + params["vlad_b"]
    a = jax.nn.softmax(logits, axis=-1)
    agg = jnp.einsum("bnk,bnc->bkc", bf(a), xnb)
    vlad = agg - params["centroids"][None] * jnp.sum(a, axis=1)[..., None]
    vlad = vlad * lax.rsqrt(jnp.sum(vlad * vlad, axis=-1, keepdims=True) + EPS)
    flat = vlad.reshape(B, K * C2)
    return flat * lax.rsqrt(jnp.sum(flat * flat, axis=-1, keepdims=True) + EPS)


if __name__ == "__main__":
    # Small deterministic configuration (BEV image is single-channel NCHW).
    B, Cin, H, W = 2, 1, 16, 16
    C1, C2, K = 16, 32, 8

    key = jax.random.PRNGKey(0)
    ks = jax.random.split(key, 8)
    params = {
        "w1": 0.1 * jax.random.normal(ks[0], (Cin * 9, C1), jnp.float32),
        "b1": 0.1 * jax.random.normal(ks[1], (1, C1), jnp.float32),
        "w2": 0.1 * jax.random.normal(ks[2], (C1, C2), jnp.float32),
        "b2": 0.1 * jax.random.normal(ks[3], (1, C2), jnp.float32),
        "vlad_w": jax.random.normal(ks[4], (K, C2), jnp.float32),
        "vlad_b": 0.1 * jax.random.normal(ks[5], (1, K), jnp.float32),
        "centroids": jax.random.normal(ks[6], (K, C2), jnp.float32),
    }
    x = jax.random.normal(ks[7], (B, Cin, H, W), jnp.float32)

    fwd = jax.jit(functools.partial(bevplace_forward, tile_n=None))
    out = jax.block_until_ready(fwd(x, params))

    ref = jax.block_until_ready(bevplace_reference(x, params))
    assert out.shape == (B, K * C2)
    assert jnp.allclose(out, ref, atol=1e-2, rtol=1e-2), \
        float(jnp.max(jnp.abs(out - ref)))

    print("KERNEL_OK")
</pallas_src>

<mosaic_0001>
module attributes {stable_mosaic.version = 11 : i64} {
  func.func @bevplace_kernel(%arg0: i32, %arg1: i32, %arg2: memref<1x9x256xbf16, #tpu.memory_space<vmem>>, %arg3: memref<128x9xbf16, #tpu.memory_space<vmem>>, %arg4: memref<128x1xf32, #tpu.memory_space<vmem>>, %arg5: memref<128x128xbf16, #tpu.memory_space<vmem>>, %arg6: memref<128x1xf32, #tpu.memory_space<vmem>>, %arg7: memref<8x128xbf16, #tpu.memory_space<vmem>>, %arg8: memref<8x1xf32, #tpu.memory_space<vmem>>, %arg9: memref<8x128xf32, #tpu.memory_space<vmem>>, %arg10: memref<1x8x128xf32, #tpu.memory_space<vmem>>, %arg11: memref<8x128xf32, #tpu.memory_space<vmem>>, %arg12: memref<8x1xf32, #tpu.memory_space<vmem>>) attributes {dimension_semantics = [#tpu.dimension_semantics<parallel>, #tpu.dimension_semantics<arbitrary>], iteration_bounds = array<i64: 2, 1>, scalar_prefetch = 0 : i64, scratch_operands = 2 : i64, tpu.core_type = #tpu.core_type<tc>, window_params = [{transform_indices = @transform_0, window_bounds = array<i64: 1, 9, 256>}, {pipeline_mode = #tpu.pipeline_mode<synchronous>, transform_indices = @transform_1, window_bounds = array<i64: 128, 9>}, {pipeline_mode = #tpu.pipeline_mode<synchronous>, transform_indices = @transform_2, window_bounds = array<i64: 128, 1>}, {pipeline_mode = #tpu.pipeline_mode<synchronous>, transform_indices = @transform_3, window_bounds = array<i64: 128, 128>}, {pipeline_mode = #tpu.pipeline_mode<synchronous>, transform_indices = @transform_4, window_bounds = array<i64: 128, 1>}, {pipeline_mode = #tpu.pipeline_mode<synchronous>, transform_indices = @transform_5, window_bounds = array<i64: 8, 128>}, {pipeline_mode = #tpu.pipeline_mode<synchronous>, transform_indices = @transform_6, window_bounds = array<i64: 8, 1>}, {pipeline_mode = #tpu.pipeline_mode<synchronous>, transform_indices = @transform_7, window_bounds = array<i64: 8, 128>}, {transform_indices = @transform_8, window_bounds = array<i64: 1, 8, 128>}]} {
    %c0_i32 = arith.constant 0 : i32
    %0 = arith.cmpi eq, %arg1, %c0_i32 : i32
    %1 = arith.extui %0 : i1 to i32
    %c0_i32_0 = arith.constant 0 : i32
    %2 = arith.cmpi ne, %1, %c0_i32_0 : i32
    scf.if %2 {
      %cst_34 = arith.constant 0.000000e+00 : f32
      %55 = vector.broadcast %cst_34 : f32 to vector<8x128xf32>
      %c0_35 = arith.constant 0 : index
      %c0_36 = arith.constant 0 : index
      %56 = vector.load %arg11[%c0_35, %c0_36] : memref<8x128xf32, #tpu.memory_space<vmem>>, vector<8x128xf32>
      tpu.vector_store %arg11[%c0_35, %c0_36], %55 {strides = array<i32>} : memref<8x128xf32, #tpu.memory_space<vmem>>, vector<8x128xf32>,
      %cst_37 = arith.constant 0.000000e+00 : f32
      %57 = vector.broadcast %cst_37 : f32 to vector<8x1xf32>
      %c0_38 = arith.constant 0 : index
      %c0_39 = arith.constant 0 : index
      %58 = vector.load %arg12[%c0_38, %c0_39] : memref<8x1xf32, #tpu.memory_space<vmem>>, vector<8x1xf32>
      tpu.vector_store %arg12[%c0_38, %c0_39], %57 {strides = array<i32>} : memref<8x1xf32, #tpu.memory_space<vmem>>, vector<8x1xf32>,
    } else {
    }
    %c0 = arith.constant 0 : index
    %c0_1 = arith.constant 0 : index
    %c0_2 = arith.constant 0 : index
    %3 = vector.load %arg2[%c0, %c0_1, %c0_2] : memref<1x9x256xbf16, #tpu.memory_space<vmem>>, vector<1x9x256xbf16>
    %4 = vector.shape_cast %3 : vector<1x9x256xbf16> to vector<9x256xbf16>
    %c0_3 = arith.constant 0 : index
    %c0_4 = arith.constant 0 : index
    %5 = vector.load %arg3[%c0_3, %c0_4] : memref<128x9xbf16, #tpu.memory_space<vmem>>, vector<128x9xbf16>
    %cst = arith.constant dense<0.000000e+00> : vector<128x256xf32>
    %6 = tpu.matmul %5, %4, %cst {dimension_numbers = #tpu.dot_dimension_numbers<[1], [0], [0], [1], [0, 0, 1, 1], [], []>} : vector<128x9xbf16>, vector<9x256xbf16>, vector<128x256xf32> -> vector<128x256xf32>
    %c0_5 = arith.constant 0 : index
    %c0_6 = arith.constant 0 : index
    %7 = vector.load %arg4[%c0_5, %c0_6] : memref<128x1xf32, #tpu.memory_space<vmem>>, vector<128x1xf32>
    %8 = vector.broadcast %7 : vector<128x1xf32> to vector<128x256xf32>
    %9 = arith.addf %6, %8 : vector<128x256xf32>
    %cst_7 = arith.constant 0.000000e+00 : f32
    %10 = vector.broadcast %cst_7 : f32 to vector<128x256xf32>
    %11 = arith.maximumf %9, %10 : vector<128x256xf32>
    %12 = arith.truncf %11 : vector<128x256xf32> to vector<128x256xbf16>
    %c0_8 = arith.constant 0 : index
    %c0_9 = arith.constant 0 : index
    %13 = vector.load %arg5[%c0_8, %c0_9] : memref<128x128xbf16, #tpu.memory_space<vmem>>, vector<128x128xbf16>
    %cst_10 = arith.constant dense<0.000000e+00> : vector<128x256xf32>
    %14 = tpu.matmul %13, %12, %cst_10 {dimension_numbers = #tpu.dot_dimension_numbers<[1], [0], [0], [1], [0, 0, 1, 1], [], []>} : vector<128x128xbf16>, vector<128x256xbf16>, vector<128x256xf32> -> vector<128x256xf32>
    %c0_11 = arith.constant 0 : index
    %c0_12 = arith.constant 0 : index
    %15 = vector.load %arg6[%c0_11, %c0_12] : memref<128x1xf32, #tpu.memory_space<vmem>>, vector<128x1xf32>
    %16 = vector.broadcast %15 : vector<128x1xf32> to vector<128x256xf32>
    %17 = arith.addf %14, %16 : vector<128x256xf32>
    %18 = arith.mulf %17, %17 : vector<128x256xf32>
    %cst_13 = arith.constant dense<0.000000e+00> : vector<256xf32>
    %19 = vector.multi_reduction <add>, %18, %cst_13 [0] : vector<128x256xf32> to vector<256xf32>
    %20 = vector.shape_cast %19 : vector<256xf32> to vector<1x256xf32>
    %cst_14 = arith.constant 9.99999996E-13 : f32
    %21 = vector.broadcast %cst_14 : f32 to vector<1x256xf32>
    %22 = arith.addf %20, %21 : vector<1x256xf32>
    %23 = math.rsqrt %22 : vector<1x256xf32>
    %24 = vector.broadcast %23 : vector<1x256xf32> to vector<128x256xf32>
    %25 = arith.mulf %17, %24 : vector<128x256xf32>
    %26 = arith.truncf %25 : vector<128x256xf32> to vector<128x256xbf16>
    %c0_15 = arith.constant 0 : index
    %c0_16 = arith.constant 0 : index
    %27 = vector.load %arg7[%c0_15, %c0_16] : memref<8x128xbf16, #tpu.memory_space<vmem>>, vector<8x128xbf16>
    %cst_17 = arith.constant dense<0.000000e+00> : vector<8x256xf32>
    %28 = tpu.matmul %27, %26, %cst_17 {dimension_numbers = #tpu.dot_dimension_numbers<[1], [0], [0], [1], [0, 0, 1, 1], [], []>} : vector<8x128xbf16>, vector<128x256xbf16>, vector<8x256xf32> -> vector<8x256xf32>
    %c0_18 = arith.constant 0 : index
    %c0_19 = arith.constant 0 : index
    %29 = vector.load %arg8[%c0_18, %c0_19] : memref<8x1xf32, #tpu.memory_space<vmem>>, vector<8x1xf32>
    %30 = vector.broadcast %29 : vector<8x1xf32> to vector<8x256xf32>
    %31 = arith.addf %28, %30 : vector<8x256xf32>
    %cst_20 = arith.constant dense<0xFF800000> : vector<256xf32>
    %32 = vector.multi_reduction <maximumf>, %31, %cst_20 [0] : vector<8x256xf32> to vector<256xf32>
    %33 = vector.shape_cast %32 : vector<256xf32> to vector<1x256xf32>
    %34 = vector.broadcast %33 : vector<1x256xf32> to vector<8x256xf32>
    %35 = arith.subf %31, %34 : vector<8x256xf32>
    %36 = math.exp %35 : vector<8x256xf32>
    %cst_21 = arith.constant dense<0.000000e+00> : vector<256xf32>
    %37 = vector.multi_reduction <add>, %36, %cst_21 [0] : vector<8x256xf32> to vector<256xf32>
    %38 = vector.shape_cast %37 : vector<256xf32> to vector<1x256xf32>
    %39 = tpu.reciprocal %38 {approx = true} : vector<1x256xf32> -> vector<1x256xf32>
    %40 = vector.broadcast %39 : vector<1x256xf32> to vector<8x256xf32>
    %41 = arith.mulf %36, %40 : vector<8x256xf32>
    %c0_22 = arith.constant 0 : index
    %c0_23 = arith.constant 0 : index
    %42 = vector.load %arg11[%c0_22, %c0_23] : memref<8x128xf32, #tpu.memory_space<vmem>>, vector<8x128xf32>
    %43 = arith.truncf %41 : vector<8x256xf32> to vector<8x256xbf16>
    %cst_24 = arith.constant dense<0.000000e+00> : vector<8x128xf32>
    %44 = tpu.matmul %43, %26, %cst_24 {dimension_numbers = #tpu.dot_dimension_numbers<[1], [1], [0], [0], [0, 0, 1, 0], [], []>} : vector<8x256xbf16>, vector<128x256xbf16>, vector<8x128xf32> -> vector<8x128xf32>
    %45 = arith.addf %42, %44 : vector<8x128xf32>
    %c0_25 = arith.constant 0 : index
    %c0_26 = arith.constant 0 : index
    %46 = vector.load %arg11[%c0_25, %c0_26] : memref<8x128xf32, #tpu.memory_space<vmem>>, vector<8x128xf32>
    tpu.vector_store %arg11[%c0_25, %c0_26], %45 {strides = array<i32>} : memref<8x128xf32, #tpu.memory_space<vmem>>, vector<8x128xf32>,
    %c0_27 = arith.constant 0 : index
    %c0_28 = arith.constant 0 : index
    %47 = vector.load %arg12[%c0_27, %c0_28] : memref<8x1xf32, #tpu.memory_space<vmem>>, vector<8x1xf32>
    %cst_29 = arith.constant dense<0.000000e+00> : vector<8xf32>
    %48 = vector.multi_reduction <add>, %41, %cst_29 [1] : vector<8x256xf32> to vector<8xf32>
    %49 = vector.shape_cast %48 : vector<8xf32> to vector<8x1xf32>
    %50 = arith.addf %47, %49 : vector<8x1xf32>
    %c0_30 = arith.constant 0 : index
    %c0_31 = arith.constant 0 : index
    %51 = vector.load %arg12[%c0_30, %c0_31] : memref<8x1xf32, #tpu.memory_space<vmem>>, vector<8x1xf32>
    tpu.vector_store %arg12[%c0_30, %c0_31], %50 {strides = array<i32>} : memref<8x1xf32, #tpu.memory_space<vmem>>, vector<8x1xf32>,
    %c0_i32_32 = arith.constant 0 : i32
    %52 = arith.cmpi eq, %arg1, %c0_i32_32 : i32
    %53 = arith.extui %52 : i1 to i32
    %c0_i32_33 = arith.constant 0 : i32
    %54 = arith.cmpi ne, %53, %c0_i32_33 : i32
    scf.if %54 {
      %c0_34 = arith.constant 0 : index
      %c0_35 = arith.constant 0 : index
      %55 = vector.load %arg11[%c0_34, %c0_35] : memref<8x128xf32, #tpu.memory_space<vmem>>, vector<8x128xf32>
      %c0_36 = arith.constant 0 : index
      %c0_37 = arith.constant 0 : index
      %56 = vector.load %arg9[%c0_36, %c0_37] : memref<8x128xf32, #tpu.memory_space<vmem>>, vector<8x128xf32>
      %c0_38 = arith.constant 0 : index
      %c0_39 = arith.constant 0 : index
      %57 = vector.load %arg12[%c0_38, %c0_39] : memref<8x1xf32, #tpu.memory_space<vmem>>, vector<8x1xf32>
      %58 = vector.broadcast %57 : vector<8x1xf32> to vector<8x128xf32>
      %59 = arith.mulf %56, %58 : vector<8x128xf32>
      %60 = arith.subf %55, %59 : vector<8x128xf32>
      %61 = arith.mulf %60, %60 : vector<8x128xf32>
      %cst_40 = arith.constant dense<0.000000e+00> : vector<8xf32>
      %62 = vector.multi_reduction <add>, %61, %cst_40 [1] : vector<8x128xf32> to vector<8xf32>
      %63 = vector.shape_cast %62 : vector<8xf32> to vector<8x1xf32>
      %cst_41 = arith.constant 9.99999996E-13 : f32
      %64 = vector.broadcast %cst_41 : f32 to vector<8x1xf32>
      %65 = arith.addf %63, %64 : vector<8x1xf32>
      %66 = math.rsqrt %65 : vector<8x1xf32>
      %67 = vector.broadcast %66 : vector<8x1xf32> to vector<8x128xf32>
      %68 = arith.mulf %60, %67 : vector<8x128xf32>
      %69 = arith.mulf %68, %68 : vector<8x128xf32>
      %70 = vector.shape_cast %69 : vector<8x128xf32> to vector<1x8x128xf32>
      %cst_42 = arith.constant dense<0.000000e+00> : vector<1xf32>
      %71 = vector.multi_reduction <add>, %70, %cst_42 [1, 2] : vector<1x8x128xf32> to vector<1xf32>
      %72 = vector.shape_cast %71 : vector<1xf32> to vector<1x1x1xf32>
      %73 = vector.extract %72[0, 0, 0] : f32 from vector<1x1x1xf32>
      %74 = vector.broadcast %73 : f32 to vector<1x1xf32>
      %cst_43 = arith.constant 9.99999996E-13 : f32
      %75 = vector.broadcast %cst_43 : f32 to vector<1x1xf32>
      %76 = arith.addf %74, %75 : vector<1x1xf32>
      %77 = math.rsqrt %76 : vector<1x1xf32>
      %78 = vector.broadcast %77 : vector<1x1xf32> to vector<8x128xf32>
      %79 = arith.mulf %68, %78 : vector<8x128xf32>
      %c0_44 = arith.constant 0 : index
      %c0_45 = arith.constant 0 : index
      %c0_46 = arith.constant 0 : index
      %80 = vector.load %arg10[%c0_44, %c0_45, %c0_46] : memref<1x8x128xf32, #tpu.memory_space<vmem>>, vector<1x8x128xf32>
      %81 = vector.shape_cast %80 : vector<1x8x128xf32> to vector<8x128xf32>
      %82 = vector.shape_cast %79 : vector<8x128xf32> to vector<1x8x128xf32>
      tpu.vector_store %arg10[%c0_44, %c0_45, %c0_46], %82 {strides = array<i32>} : memref<1x8x128xf32, #tpu.memory_space<vmem>>, vector<1x8x128xf32>,
    } else {
    }
    return
  }
  func.func @transform_0(%arg0: i32, %arg1: i32) -> (i32, i32, i32) {
    %c0_i32 = arith.constant 0 : i32
    %c0_i32_0 = arith.constant 0 : i32
    return %arg0, %c0_i32, %arg1 : i32, i32, i32
  }
  func.func @transform_1(%arg0: i32, %arg1: i32) -> (i32, i32) {
    %c0_i32 = arith.constant 0 : i32
    %c0_i32_0 = arith.constant 0 : i32
    %c0_i32_1 = arith.constant 0 : i32
    return %c0_i32, %c0_i32_0 : i32, i32
  }
  func.func @transform_2(%arg0: i32, %arg1: i32) -> (i32, i32) {
    %c0_i32 = arith.constant 0 : i32
    %c0_i32_0 = arith.constant 0 : i32
    %c0_i32_1 = arith.constant 0 : i32
    return %c0_i32, %c0_i32_0 : i32, i32
  }
  func.func @transform_3(%arg0: i32, %arg1: i32) -> (i32, i32) {
    %c0_i32 = arith.constant 0 : i32
    %c0_i32_0 = arith.constant 0 : i32
    %c0_i32_1 = arith.constant 0 : i32
    return %c0_i32, %c0_i32_0 : i32, i32
  }
  func.func @transform_4(%arg0: i32, %arg1: i32) -> (i32, i32) {
    %c0_i32 = arith.constant 0 : i32
    %c0_i32_0 = arith.constant 0 : i32
    %c0_i32_1 = arith.constant 0 : i32
    return %c0_i32, %c0_i32_0 : i32, i32
  }
  func.func @transform_5(%arg0: i32, %arg1: i32) -> (i32, i32) {
    %c0_i32 = arith.constant 0 : i32
    %c0_i32_0 = arith.constant 0 : i32
    %c0_i32_1 = arith.constant 0 : i32
    return %c0_i32, %c0_i32_0 : i32, i32
  }
  func.func @transform_6(%arg0: i32, %arg1: i32) -> (i32, i32) {
    %c0_i32 = arith.constant 0 : i32
    %c0_i32_0 = arith.constant 0 : i32
    %c0_i32_1 = arith.constant 0 : i32
    return %c0_i32, %c0_i32_0 : i32, i32
  }
  func.func @transform_7(%arg0: i32, %arg1: i32) -> (i32, i32) {
    %c0_i32 = arith.constant 0 : i32
    %c0_i32_0 = arith.constant 0 : i32
    %c0_i32_1 = arith.constant 0 : i32
    return %c0_i32, %c0_i32_0 : i32, i32
  }
  func.func @transform_8(%arg0: i32, %arg1: i32) -> (i32, i32, i32) {
    %c0_i32 = arith.constant 0 : i32
    %c0_i32_0 = arith.constant 0 : i32
    %c0_i32_1 = arith.constant 0 : i32
    return %arg0, %c0_i32, %c0_i32_0 : i32, i32, i32
  }
}

</mosaic_0001>

<llo_original>
// kernel: bevplace_forward.1
$region0: #{bevplace_forward.1}
  #allocation0 [shape = 'u32[]', space=smem, size = 0x4, offset = 0x4, fixed_abs, tag = 'smem constant byte address 0x4 - core index']
  #allocation1 [shape = 'u32[144,128]{1,0:T(1,128)}', space=vmem, size = 0x12000, scoped, tag = 'internal scratch']
  #allocation2 [shape = 'f32[8,128]{1,0:T(8,128)}', space=vmem, size = 0x1000, scoped, tag = 'scratch operand']
  #allocation3 [shape = 'f32[8,1]{1,0:T(8,128)}', space=vmem, size = 0x1000, scoped, tag = 'scratch operand']
  %s0 = inlined_call_operand.vmem [shape: bf16[2,9,256], index: 0, kind: input, shape index: {}]
  %s1 = inlined_call_operand.vmem [shape: bf16[128,9], index: 1, kind: input, shape index: {}]
  %s2 = inlined_call_operand.vmem [shape: f32[128,1], index: 2, kind: input, shape index: {}]
  %s3 = inlined_call_operand.vmem [shape: bf16[128,128], index: 3, kind: input, shape index: {}]
  %s4 = inlined_call_operand.vmem [shape: f32[128,1], index: 4, kind: input, shape index: {}]
  %s5 = inlined_call_operand.vmem [shape: bf16[8,128], index: 5, kind: input, shape index: {}]
  %s6 = inlined_call_operand.vmem [shape: f32[8,1], index: 6, kind: input, shape index: {}]
  %s7 = inlined_call_operand.vmem [shape: f32[8,128], index: 7, kind: input, shape index: {}]
  %s8 = inlined_call_operand.vmem [shape: f32[2,8,128], index: 8, kind: output, shape index: {}]
  %s9 = sld [smem:[#allocation0]]
  $region73: #{bevplace_forward.1} parent=0
    _
  %s11 = ssub.s32 1, %s9
  %s12 = scalar_select 0, %s11, %s9
  loop: start=0, step=1, limit=4
  $region2: #{bevplace_forward.1} parent=0 // loop_pre_header
    _
  $region3: #{bevplace_forward.1} parent=0 // loop_header
    %s14 = sphi 0, %s18
    %p15 = scmp.ge.s32.totalorder %s14, 4
    %s21 = sphi 0, %s33
    %s22 = sphi 0, %s29
    %s23 = sphi 0, %s21
    %s24 = sphi 0, %s22
    %s25 = sphi 0, %s23
    %s26 = sphi 0, %s24
    %s38 = sphi 0, %s40
    %s41 = sphi 0, %s38
    %s42 = sphi 0, %s41
    %s58 = sphi 0, %s42
    %s62 = sphi 0, %s62
    %s64 = sphi 0, %s62
    %s65 = sphi 0, %s64
    %s79 = sphi 0, %s65
    %s83 = sphi 0, %s83
    %s85 = sphi 0, %s83
    %s86 = sphi 0, %s85
    %s100 = sphi 0, %s86
    %s104 = sphi 0, %s104
    %s106 = sphi 0, %s104
    %s107 = sphi 0, %s106
    %s121 = sphi 0, %s107
    %s125 = sphi 0, %s125
    %s127 = sphi 0, %s125
    %s128 = sphi 0, %s127
    %s142 = sphi 0, %s128
    %s146 = sphi 0, %s146
    %s148 = sphi 0, %s146
    %s149 = sphi 0, %s148
    %s163 = sphi 0, %s149
    %s167 = sphi 0, %s167
    %s169 = sphi 0, %s167
    %s170 = sphi 0, %s169
    %s184 = sphi 0, %s170
    %s188 = sphi 0, %s188
    %s190 = sphi 0, %s188
    %s191 = sphi 0, %s190
    %s205 = sphi 0, %s191
    %s211 = sphi 0, %s213
    %s214 = sphi 0, %s211
    %s215 = sphi 0, %s214
    %s231 = sphi 0, %s215
  $region4: #{bevplace_forward.1} parent=0 // loop_header_branch
    %17 = sbr.rel (%p15) target = $region8
  $region5: #{bevplace_forward.1} parent=0 // loop_body
    %s19 = ssub.s32 %s14, 1
    %s20 = ssub.s32 %s14, 2
    %s27 = sadd.s32 1, %s22
    %p28 = scmp.ge.s32.totalorder %s27, 1
    %s29 = scalar_select %p28, 0, %s27
    %s30 = sadd.s32 1, %s21
    %s31 = scalar_select %p28, %s30, %s21
    %p32 = scmp.ge.s32.totalorder %s31, 2
    %s33 = scalar_select %p32, 0, %s31
    %s34 = ssub.s32 %s21, %s33
    %s35 = ssub.s32 %s22, %s29
    %s36 = sor.u32 %s34, %s35
    %p37 = scmp.eq.s32.totalorder %s36, 0
    %s39 = sadd.s32 %s38, 1
    %s40 = scalar_select %p37, %s38, %s39
    %p43 = pneg %p37
    %p44 = scmp.eq.s32.totalorder %s14, 1
    %p45 = por %p43, %p44
    %p46 = scmp.ne.s32.totalorder %s38, %s41
    %p47 = scmp.eq.s32.totalorder %s14, 0
    %p48 = por %p46, %p47
    %p49 = scmp.ne.s32.totalorder %s38, %s41
    %p50 = scmp.eq.s32.totalorder %s19, 1
    %p51 = por %p49, %p50
    %p52 = scmp.ne.s32.totalorder %s41, %s42
    %p53 = scmp.eq.s32.totalorder %s19, 0
    %p54 = por %p52, %p53
    %p55 = scmp.ne.s32.totalorder %s41, %s42
    %p56 = scmp.eq.s32.totalorder %s20, 1
    %p57 = por %p55, %p56
    %p59 = scmp.ne.s32.totalorder %s42, %s58
    %p60 = scmp.eq.s32.totalorder %s20, 0
    %p61 = por %p59, %p60
    %s63 = sadd.s32 %s62, 1
    %p66 = scmp.eq.s32.totalorder %s14, 1
    %p67 = scmp.ne.s32.totalorder %s62, %s64
    %p68 = scmp.eq.s32.totalorder %s14, 0
    %p69 = por %p67, %p68
    %p70 = scmp.ne.s32.totalorder %s62, %s64
    %p71 = scmp.eq.s32.totalorder %s19, 1
    %p72 = por %p70, %p71
    %p73 = scmp.ne.s32.totalorder %s64, %s65
    %p74 = scmp.eq.s32.totalorder %s19, 0
    %p75 = por %p73, %p74
    %p76 = scmp.ne.s32.totalorder %s64, %s65
    %p77 = scmp.eq.s32.totalorder %s20, 1
    %p78 = por %p76, %p77
    %p80 = scmp.ne.s32.totalorder %s65, %s79
    %p81 = scmp.eq.s32.totalorder %s20, 0
    %p82 = por %p80, %p81
    %s84 = sadd.s32 %s83, 1
    %p87 = scmp.eq.s32.totalorder %s14, 1
    %p88 = scmp.ne.s32.totalorder %s83, %s85
    %p89 = scmp.eq.s32.totalorder %s14, 0
    %p90 = por %p88, %p89
    %p91 = scmp.ne.s32.totalorder %s83, %s85
    %p92 = scmp.eq.s32.totalorder %s19, 1
    %p93 = por %p91, %p92
    %p94 = scmp.ne.s32.totalorder %s85, %s86
    %p95 = scmp.eq.s32.totalorder %s19, 0
    %p96 = por %p94, %p95
    %p97 = scmp.ne.s32.totalorder %s85, %s86
    %p98 = scmp.eq.s32.totalorder %s20, 1
    %p99 = por %p97, %p98
    %p101 = scmp.ne.s32.totalorder %s86, %s100
    %p102 = scmp.eq.s32.totalorder %s20, 0
    %p103 = por %p101, %p102
    %s105 = sadd.s32 %s104, 1
    %p108 = scmp.eq.s32.totalorder %s14, 1
    %p109 = scmp.ne.s32.totalorder %s104, %s106
    %p110 = scmp.eq.s32.totalorder %s14, 0
    %p111 = por %p109, %p110
    %p112 = scmp.ne.s32.totalorder %s104, %s106
    %p113 = scmp.eq.s32.totalorder %s19, 1
    %p114 = por %p112, %p113
    %p115 = scmp.ne.s32.totalorder %s106, %s107
    %p116 = scmp.eq.s32.totalorder %s19, 0
    %p117 = por %p115, %p116
    %p118 = scmp.ne.s32.totalorder %s106, %s107
    %p119 = scmp.eq.s32.totalorder %s20, 1
    %p120 = por %p118, %p119
    %p122 = scmp.ne.s32.totalorder %s107, %s121
    %p123 = scmp.eq.s32.totalorder %s20, 0
    %p124 = por %p122, %p123
    %s126 = sadd.s32 %s125, 1
    %p129 = scmp.eq.s32.totalorder %s14, 1
    %p130 = scmp.ne.s32.totalorder %s125, %s127
    %p131 = scmp.eq.s32.totalorder %s14, 0
    %p132 = por %p130, %p131
    %p133 = scmp.ne.s32.totalorder %s125, %s127
    %p134 = scmp.eq.s32.totalorder %s19, 1
    %p135 = por %p133, %p134
    %p136 = scmp.ne.s32.totalorder %s127, %s128
    %p137 = scmp.eq.s32.totalorder %s19, 0
    %p138 = por %p136, %p137
    %p139 = scmp.ne.s32.totalorder %s127, %s128
    %p140 = scmp.eq.s32.totalorder %s20, 1
    %p141 = por %p139, %p140
    %p143 = scmp.ne.s32.totalorder %s128, %s142
    %p144 = scmp.eq.s32.totalorder %s20, 0
    %p145 = por %p143, %p144
    %s147 = sadd.s32 %s146, 1
    %p150 = scmp.eq.s32.totalorder %s14, 1
    %p151 = scmp.ne.s32.totalorder %s146, %s148
    %p152 = scmp.eq.s32.totalorder %s14, 0
    %p153 = por %p151, %p152
    %p154 = scmp.ne.s32.totalorder %s146, %s148
    %p155 = scmp.eq.s32.totalorder %s19, 1
    %p156 = por %p154, %p155
    %p157 = scmp.ne.s32.totalorder %s148, %s149
    %p158 = scmp.eq.s32.totalorder %s19, 0
    %p159 = por %p157, %p158
    %p160 = scmp.ne.s32.totalorder %s148, %s149
    %p161 = scmp.eq.s32.totalorder %s20, 1
    %p162 = por %p160, %p161
    %p164 = scmp.ne.s32.totalorder %s149, %s163
    %p165 = scmp.eq.s32.totalorder %s20, 0
    %p166 = por %p164, %p165
    %s168 = sadd.s32 %s167, 1
    %p171 = scmp.eq.s32.totalorder %s14, 1
    %p172 = scmp.ne.s32.totalorder %s167, %s169
    %p173 = scmp.eq.s32.totalorder %s14, 0
    %p174 = por %p172, %p173
    %p175 = scmp.ne.s32.totalorder %s167, %s169
    %p176 = scmp.eq.s32.totalorder %s19, 1
    %p177 = por %p175, %p176
    %p178 = scmp.ne.s32.totalorder %s169, %s170
    %p179 = scmp.eq.s32.totalorder %s19, 0
    %p180 = por %p178, %p179
    %p181 = scmp.ne.s32.totalorder %s169, %s170
    %p182 = scmp.eq.s32.totalorder %s20, 1
    %p183 = por %p181, %p182
    %p185 = scmp.ne.s32.totalorder %s170, %s184
    %p186 = scmp.eq.s32.totalorder %s20, 0
    %p187 = por %p185, %p186
    %s189 = sadd.s32 %s188, 1
    %p192 = scmp.eq.s32.totalorder %s14, 1
    %p193 = scmp.ne.s32.totalorder %s188, %s190
    %p194 = scmp.eq.s32.totalorder %s14, 0
    %p195 = por %p193, %p194
    %p196 = scmp.ne.s32.totalorder %s188, %s190
    %p197 = scmp.eq.s32.totalorder %s19, 1
    %p198 = por %p196, %p197
    %p199 = scmp.ne.s32.totalorder %s190, %s191
    %p200 = scmp.eq.s32.totalorder %s19, 0
    %p201 = por %p199, %p200
    %p202 = scmp.ne.s32.totalorder %s190, %s191
    %p203 = scmp.eq.s32.totalorder %s20, 1
    %p204 = por %p202, %p203
    %p206 = scmp.ne.s32.totalorder %s191, %s205
    %p207 = scmp.eq.s32.totalorder %s20, 0
    %p208 = por %p206, %p207
    %s209 = ssub.s32 %s21, %s33
    %p210 = scmp.eq.s32.totalorder %s209, 0
    %s212 = sadd.s32 %s211, 1
    %s213 = scalar_select %p210, %s211, %s212
    %p216 = pneg %p210
    %p217 = scmp.eq.s32.totalorder %s14, 1
    %p218 = por %p216, %p217
    %p219 = scmp.ne.s32.totalorder %s211, %s214
    %p220 = scmp.eq.s32.totalorder %s14, 0
    %p221 = por %p219, %p220
    %p222 = scmp.ne.s32.totalorder %s211, %s214
    %p223 = scmp.eq.s32.totalorder %s19, 1
    %p224 = por %p222, %p223
    %p225 = scmp.ne.s32.totalorder %s214, %s215
    %p226 = scmp.eq.s32.totalorder %s19, 0
    %p227 = por %p225, %p226
    %p228 = scmp.ne.s32.totalorder %s214, %s215
    %p229 = scmp.eq.s32.totalorder %s20, 1
    %p230 = por %p228, %p229
    %p232 = scmp.ne.s32.totalorder %s215, %s231
    %p233 = scmp.eq.s32.totalorder %s20, 0
    %p234 = por %p232, %p233
    %p235 = scmp.le.s32.totalorder 1, %s14
    %p236 = scmp.lt.s32.totalorder %s14, 3
    %p237 = pnand %p235, %p236
    %p238 = pneg %p237
    // Predicated region
    $region9: #{bevplace_forward.1} parent=5 // pred_check
      _
    $region10: #{bevplace_forward.1} parent=5 // pred_check_branch
      %240 = sbr.rel (%p237) target = $region12
    $region11: #{bevplace_forward.1} parent=5 // pred_region
      %s241 = ssub.s32 %s14, 1
      // Predicated region
      $region13: #{bevplace_forward.1} parent=11 // pred_check
        %p242 = pneg %p75
      $region14: #{bevplace_forward.1} parent=11 // pred_check_branch
        %244 = sbr.rel (%p242) target = $region16
      $region15: #{bevplace_forward.1} parent=11 // pred_region
        _
      $region16: #{bevplace_forward.1} parent=11 // pred_fallthru
        _
      // Predicated region
      $region17: #{bevplace_forward.1} parent=11 // pred_check
        %p245 = pneg %p96
      $region18: #{bevplace_forward.1} parent=11 // pred_check_branch
        %247 = sbr.rel (%p245) target = $region20
      $region19: #{bevplace_forward.1} parent=11 // pred_region
        _
      $region20: #{bevplace_forward.1} parent=11 // pred_fallthru
        _
      // Predicated region
      $region21: #{bevplace_forward.1} parent=11 // pred_check
        %p248 = pneg %p117
      $region22: #{bevplace_forward.1} parent=11 // pred_check_branch
        %250 = sbr.rel (%p248) target = $region24
      $region23: #{bevplace_forward.1} parent=11 // pred_region
        _
      $region24: #{bevplace_forward.1} parent=11 // pred_fallthru
        _
      // Predicated region
      $region25: #{bevplace_forward.1} parent=11 // pred_check
        %p251 = pneg %p138
      $region26: #{bevplace_forward.1} parent=11 // pred_check_branch
        %253 = sbr.rel (%p251) target = $region28
      $region27: #{bevplace_forward.1} parent=11 // pred_region
        _
      $region28: #{bevplace_forward.1} parent=11 // pred_fallthru
        _
      // Predicated region
      $region29: #{bevplace_forward.1} parent=11 // pred_check
        %p254 = pneg %p159
      $region30: #{bevplace_forward.1} parent=11 // pred_check_branch
        %256 = sbr.rel (%p254) target = $region32
      $region31: #{bevplace_forward.1} parent=11 // pred_region
        _
      $region32: #{bevplace_forward.1} parent=11 // pred_fallthru
        _
      // Predicated region
      $region33: #{bevplace_forward.1} parent=11 // pred_check
        %p257 = pneg %p180
      $region34: #{bevplace_forward.1} parent=11 // pred_check_branch
        %259 = sbr.rel (%p257) target = $region36
      $region35: #{bevplace_forward.1} parent=11 // pred_region
        _
      $region36: #{bevplace_forward.1} parent=11 // pred_fallthru
        _
      // Predicated region
      $region37: #{bevplace_forward.1} parent=11 // pred_check
        %p260 = pneg %p201
      $region38: #{bevplace_forward.1} parent=11 // pred_check_branch
        %262 = sbr.rel (%p260) target = $region40
      $region39: #{bevplace_forward.1} parent=11 // pred_region
        _
      $region40: #{bevplace_forward.1} parent=11 // pred_fallthru
        _
    $region12: #{bevplace_forward.1} parent=5 // pred_fallthru
      _
    %p263 = scmp.lt.s32.totalorder %s14, 2
    // Predicated region
    $region41: #{bevplace_forward.1} parent=5 // pred_check
      %p264 = pneg %p263
    $region42: #{bevplace_forward.1} parent=5 // pred_check_branch
      %266 = sbr.rel (%p264) target = $region44
    $region43: #{bevplace_forward.1} parent=5 // pred_region
      // Predicated region
      $region45: #{bevplace_forward.1} parent=43 // pred_check
        %p267 = pneg %p48
      $region46: #{bevplace_forward.1} parent=43 // pred_check_branch
        %269 = sbr.rel (%p267) target = $region48
      $region47: #{bevplace_forward.1} parent=43 // pred_region
        %s270 = smul.u32 2, %s22
        %p271 = scmp.lt.s32.totalorder %s21, 1
        %s272 = scalar_select %p271, %s21, 1
        %p273 = scmp.lt.s32.totalorder %s270, 1
        %s274 = scalar_select %p273, %s270, 1
        %s275 = smul.addr %s272, 4
        %s276 = sadd.s32 %s274, %s275
        %s277 = smul.addr %s276, 4
        %s278 = scalar_lea.vmem %s0, %s277
        %s279 = smul.u32 2, %s22
      $region48: #{bevplace_forward.1} parent=43 // pred_fallthru
        _
    $region44: #{bevplace_forward.1} parent=5 // pred_fallthru
      _
    %p280 = scmp.le.s32.totalorder 1, %s14
    %p281 = scmp.lt.s32.totalorder %s14, 3
    %p282 = pnand %p280, %p281
    %p283 = pneg %p282
    // Predicated region
    $region49: #{bevplace_forward.1} parent=5 // pred_check
      _
    $region50: #{bevplace_forward.1} parent=5 // pred_check_branch
      %285 = sbr.rel (%p282) target = $region52
    $region51: #{bevplace_forward.1} parent=5 // pred_region
      %s286 = ssub.s32 %s14, 1
      %s287 = smul.u32 2, %s24
      %p288 = scmp.lt.s32.totalorder %s23, 1
      %s289 = scalar_select %p288, %s23, 1
      %p290 = scmp.lt.s32.totalorder %s287, 1
      %s291 = scalar_select %p290, %s287, 1
      %s292 = smul.addr %s289, 4
      %s293 = sadd.s32 %s291, %s292
      %s294 = smul.addr %s293, 4
      %s295 = scalar_lea.vmem %s0, %s294
      %p296 = pneg %p54
      %p297 = pneg %p51
      %p298 = pneg %p75
      %p299 = pneg %p72
      %p300 = pneg %p96
      %p301 = pneg %p93
      %p302 = pneg %p117
      %p303 = pneg %p114
      %p304 = pneg %p138
      %p305 = pneg %p135
      %p306 = pneg %p159
      %p307 = pneg %p156
      %p308 = pneg %p180
      %p309 = pneg %p177
      %p310 = pneg %p201
      %p311 = pneg %p198
      %p312 = pneg %p227
      %p313 = pneg %p224
      %p314 = scmp.lt.s32.totalorder %s23, 1
      %s315 = scalar_select %p314, %s23, 1
      %s316 = smul.addr %s315, 8
      %s317 = scalar_lea.vmem %s8, %s316
      %s318 = smul.u32 2, %s24
      %p319 = scmp.lt.s32.totalorder %s23, 1
      %s320 = scalar_select %p319, %s23, 1
      %p321 = scmp.lt.s32.totalorder %s318, 1
      %s322 = scalar_select %p321, %s318, 1
      %s323 = smul.addr %s320, 4
      %s324 = sadd.s32 %s322, %s323
      %s325 = smul.addr %s324, 4
      %s326 = scalar_lea.vmem %s0, %s325
      %s327 = smul.u32 2, %s24
      %p328 = scmp.lt.s32.totalorder %s23, 1
      %s329 = scalar_select %p328, %s23, 1
      %s330 = smul.addr %s329, 8
      %s331 = scalar_lea.vmem %s8, %s330
      %p333 = scmp.eq.s32.totalorder %s24, 0
      // Predicated region
      $region53: #{bevplace_forward.1} parent=51 // pred_check
        %p334 = pneg %p333
      $region54: #{bevplace_forward.1} parent=51 // pred_check_branch
        %336 = sbr.rel (%p334) target = $region56
      $region55: #{bevplace_forward.1} parent=51 // pred_region
        %337 = vst [vmem:[#allocation2] sm:$0xff] 0.0
        %vm338 = vcmask 7168
        %339 = vst.msk [vmem:[#allocation3] sm:$0xff] %vm338, 0.0
      $region56: #{bevplace_forward.1} parent=51 // pred_fallthru
        _
      %v340 = vld [vmem:[%s326] sm:$0xff]
      %v341 = vld [vmem:[%s326 + $0x8] sm:$0x11]
      %v342 = vld [vmem:[%s1] sm:$0xf]
      %v343 = vld [vmem:[%s1 + $0x4] sm:$0xf]
      %v344 = vld [vmem:[%s1 + $0x8] sm:$0xf]
      %v345 = vld [vmem:[%s1 + $0xc] sm:$0xf]
      %v346 = vld [vmem:[%s1 + $0x10] sm:$0xf]
      %v347 = vld [vmem:[%s1 + $0x14] sm:$0xf]
      %v348 = vld [vmem:[%s1 + $0x18] sm:$0xf]
      %v349 = vld [vmem:[%s1 + $0x1c] sm:$0xf]
      %v350 = vld [vmem:[%s1 + $0x20] sm:$0xf]
      %v351 = vld [vmem:[%s1 + $0x24] sm:$0xf]
      %v352 = vld [vmem:[%s1 + $0x28] sm:$0xf]
      %v353 = vld [vmem:[%s1 + $0x2c] sm:$0xf]
      %v354 = vld [vmem:[%s1 + $0x30] sm:$0xf]
      %v355 = vld [vmem:[%s1 + $0x34] sm:$0xf]
      %v356 = vld [vmem:[%s1 + $0x38] sm:$0xf]
      %v357 = vld [vmem:[%s1 + $0x3c] sm:$0xf]
      %v358 = vld [vmem:[%s2] sm:$0xff]
      %v359 = vld [vmem:[%s2 + $0x8] sm:$0xff]
      %v360 = vld [vmem:[%s2 + $0x10] sm:$0xff]
      %v361 = vld [vmem:[%s2 + $0x18] sm:$0xff]
      %v362 = vld [vmem:[%s2 + $0x20] sm:$0xff]
      %v363 = vld [vmem:[%s2 + $0x28] sm:$0xff]
      %v364 = vld [vmem:[%s2 + $0x30] sm:$0xff]
      %v365 = vld [vmem:[%s2 + $0x38] sm:$0xff]
      %v366 = vld [vmem:[%s2 + $0x40] sm:$0xff]
      %v367 = vld [vmem:[%s2 + $0x48] sm:$0xff]
      %v368 = vld [vmem:[%s2 + $0x50] sm:$0xff]
      %v369 = vld [vmem:[%s2 + $0x58] sm:$0xff]
      %v370 = vld [vmem:[%s2 + $0x60] sm:$0xff]
      %v371 = vld [vmem:[%s2 + $0x68] sm:$0xff]
      %v372 = vld [vmem:[%s2 + $0x70] sm:$0xff]
      %v373 = vld [vmem:[%s2 + $0x78] sm:$0xff]
      %375 = vset.pattern.permute.xlu0 0
      %376 = vperm.xlu0 %375, %v358
      %v377 = vpop.permute.xlu0 %376
      %380 = vset.pattern.permute.xlu0 0
      %381 = vperm.xlu0 %380, %v359
      %v382 = vpop.permute.xlu0 %381
      %385 = vset.pattern.permute.xlu0 0
      %386 = vperm.xlu0 %385, %v360
      %v387 = vpop.permute.xlu0 %386
      %390 = vset.pattern.permute.xlu0 0
      %391 = vperm.xlu0 %390, %v361
      %v392 = vpop.permute.xlu0 %391
      %395 = vset.pattern.permute.xlu0 0
      %396 = vperm.xlu0 %395, %v362
      %v397 = vpop.permute.xlu0 %396
      %400 = vset.pattern.permute.xlu0 0
      %401 = vperm.xlu0 %400, %v363
      %v402 = vpop.permute.xlu0 %401
      %405 = vset.pattern.permute.xlu0 0
      %406 = vperm.xlu0 %405, %v364
      %v407 = vpop.permute.xlu0 %406
      %410 = vset.pattern.permute.xlu0 0
      %411 = vperm.xlu0 %410, %v365
      %v412 = vpop.permute.xlu0 %411
      %415 = vset.pattern.permute.xlu0 0
      %416 = vperm.xlu0 %415, %v366
      %v417 = vpop.permute.xlu0 %416
      %420 = vset.pattern.permute.xlu0 0
      %421 = vperm.xlu0 %420, %v367
      %v422 = vpop.permute.xlu0 %421
      %425 = vset.pattern.permute.xlu0 0
      %426 = vperm.xlu0 %425, %v368
      %v427 = vpop.permute.xlu0 %426
      %430 = vset.pattern.permute.xlu0 0
      %431 = vperm.xlu0 %430, %v369
      %v432 = vpop.permute.xlu0 %431
      %435 = vset.pattern.permute.xlu0 0
      %436 = vperm.xlu0 %435, %v370
      %v437 = vpop.permute.xlu0 %436
      %440 = vset.pattern.permute.xlu0 0
      %441 = vperm.xlu0 %440, %v371
      %v442 = vpop.permute.xlu0 %441
      %445 = vset.pattern.permute.xlu0 0
      %446 = vperm.xlu0 %445, %v372
      %v447 = vpop.permute.xlu0 %446
      %450 = vset.pattern.permute.xlu0 0
      %451 = vperm.xlu0 %450, %v373
      %v452 = vpop.permute.xlu0 %451
      %v470 = vunpack.c.l.b16 %v342
      %v471 = vunpack.c.l.b16 %v343
      %v472 = vunpack.c.l.b16 %v344
      %v473 = vunpack.c.l.b16 %v345
      %v474 = vunpack.c.l.b16 %v346
      %v475 = vunpack.c.l.b16 %v347
      %v476 = vunpack.c.l.b16 %v348
      %v477 = vunpack.c.l.b16 %v349
      %v478 = vunpack.c.l.b16 %v350
      %v479 = vunpack.c.l.b16 %v351
      %v480 = vunpack.c.l.b16 %v352
      %v481 = vunpack.c.l.b16 %v353
      %v482 = vunpack.c.l.b16 %v354
      %v483 = vunpack.c.l.b16 %v355
      %v484 = vunpack.c.l.b16 %v356
      %v485 = vunpack.c.l.b16 %v357
      %v486 = vpack.c.b16 %v471, %v470
      %v487 = vpack.c.b16 %v473, %v472
      %v488 = vpack.c.b16 %v475, %v474
      %v489 = vpack.c.b16 %v477, %v476
      %v490 = vpack.c.b16 %v479, %v478
      %v491 = vpack.c.b16 %v481, %v480
      %v492 = vpack.c.b16 %v483, %v482
      %v493 = vpack.c.b16 %v485, %v484
      %v496 = vunpack.c.l.b16 %v340
      %v497 = vunpack.c.h.b16 %v340
      %v498 = vunpack.c.l.b16 %v341
      %v499 = vunpack.c.h.b16 %v341
      %v500 = vpack.c.b16 %v498, %v496
      %v501 = vpack.c.b16 %v499, %v497
      %vm502 = vcmask 72704
      %v504 = vsel %vm502, %v486, 0
      %v507 = vsel %vm502, %v487, 0
      %v510 = vsel %vm502, %v488, 0
      %v513 = vsel %vm502, %v489, 0
      %v516 = vsel %vm502, %v490, 0
      %v519 = vsel %vm502, %v491, 0
      %v522 = vsel %vm502, %v492, 0
      %v525 = vsel %vm502, %v493, 0
      %vm527 = vcmask 1043456
      %vm528 = vcmask 1044480
      %v529 = vsel %vm527, 4294967295, 65535
      %v530 = vsel %vm528, %v529, 0
      %v532 = vand.u32 %v500, %v530
      %v535 = vand.u32 %v501, %v530
      %537 = vmatprep.subr.bf16.mxu0 0
      %538 = vmatpush1.bf16.msra.mxu0 0
      %539 = vmatprep.subr.bf16.mxu0 0
      %540 = vmatpush1.bf16.msra.mxu0 0
      %541 = vmatprep.subr.bf16.mxu0 0
      %542 = vmatpush1.bf16.msra.mxu0 0
      %543 = vmatprep.subr.bf16.mxu0 0
      %544 = vmatpush1.bf16.msra.mxu0 0
      %545 = vmatprep.subr.bf16.mxu0 0
      %546 = vmatpush1.bf16.msra.mxu0 0
      %547 = vmatprep.subr.bf16.mxu0 0
      %548 = vmatpush1.bf16.msra.mxu0 0
      %549 = vmatprep.subr.bf16.mxu0 0
      %550 = vmatpush1.bf16.msra.mxu0 0
      %551 = vmatprep.subr.bf16.mxu0 %v535
      %552 = vmatpush1.bf16.msra.mxu0 %v532
      %553 = vmatprep.subr.bf16.mxu0 0
      %554 = vmatpush2.bf16.msra.mxu0 0
      %555 = vmatprep.subr.bf16.mxu0 0
      %556 = vmatpush2.bf16.msra.mxu0 0
      %557 = vmatprep.subr.bf16.mxu0 0
      %558 = vmatpush2.bf16.msra.mxu0 0
      %559 = vmatprep.subr.bf16.mxu0 0
      %560 = vmatpush2.bf16.msra.mxu0 0
      %561 = vmatprep.subr.bf16.mxu0 0
      %562 = vmatpush2.bf16.msra.mxu0 0
      %563 = vmatprep.subr.bf16.mxu0 0
      %564 = vmatpush2.bf16.msra.mxu0 0
      %565 = vmatprep.subr.bf16.mxu0 0
      %566 = vmatpush2.bf16.msra.mxu0 0
      %567 = vmatprep.subr.bf16.mxu0 0
      %568 = vmatpush2.bf16.msra.mxu0 0
      %569 = vmatprep.mubr.bf16.mxu0 0
      %570 = vmatmul.mubr.bf16.gmra.mxu0 %v504
      %v571 = vpop.f32.mrf.mxu0
      %v572 = vadd.f32 %v377, %v571
      %v573 = vpop.f32.mrf.mxu0
      %v574 = vadd.f32 %v377, %v573
      %v575 = vpop.f32.mrf.mxu0
      %v576 = vadd.f32 %v382, %v575
      %v577 = vpop.f32.mrf.mxu0
      %v578 = vadd.f32 %v382, %v577
      %579 = vmatprep.mubr.bf16.mxu0 0
      %580 = vmatmul.mubr.bf16.gmra.mxu0 %v507
      %v581 = vpop.f32.mrf.mxu0
      %v582 = vadd.f32 %v387, %v581
      %v583 = vpop.f32.mrf.mxu0
      %v584 = vadd.f32 %v387, %v583
      %v585 = vpop.f32.mrf.mxu0
      %v586 = vadd.f32 %v392, %v585
      %v587 = vpop.f32.mrf.mxu0
      %v588 = vadd.f32 %v392, %v587
      %589 = vmatprep.mubr.bf16.mxu0 0
      %590 = vmatmul.mubr.bf16.gmra.mxu0 %v510
      %v591 = vpop.f32.mrf.mxu0
      %v592 = vadd.f32 %v397, %v591
      %v593 = vpop.f32.mrf.mxu0
      %v594 = vadd.f32 %v397, %v593
      %v595 = vpop.f32.mrf.mxu0
      %v596 = vadd.f32 %v402, %v595
      %v597 = vpop.f32.mrf.mxu0
      %v598 = vadd.f32 %v402, %v597
      %599 = vmatprep.mubr.bf16.mxu0 0
      %600 = vmatmul.mubr.bf16.gmra.mxu0 %v513
      %v601 = vpop.f32.mrf.mxu0
      %v602 = vadd.f32 %v407, %v601
      %v603 = vpop.f32.mrf.mxu0
      %v604 = vadd.f32 %v407, %v603
      %v605 = vpop.f32.mrf.mxu0
      %v606 = vadd.f32 %v412, %v605
      %v607 = vpop.f32.mrf.mxu0
      %v608 = vadd.f32 %v412, %v607
      %609 = vmatprep.mubr.bf16.mxu0 0
      %610 = vmatmul.mubr.bf16.gmra.mxu0 %v516
      %v611 = vpop.f32.mrf.mxu0
      %v612 = vadd.f32 %v417, %v611
      %v613 = vpop.f32.mrf.mxu0
      %v614 = vadd.f32 %v417, %v613
      %v615 = vpop.f32.mrf.mxu0
      %v616 = vadd.f32 %v422, %v615
      %v617 = vpop.f32.mrf.mxu0
      %v618 = vadd.f32 %v422, %v617
      %619 = vmatprep.mubr.bf16.mxu0 0
      %620 = vmatmul.mubr.bf16.gmra.mxu0 %v519
      %v621 = vpop.f32.mrf.mxu0
      %v622 = vadd.f32 %v427, %v621
      %v623 = vpop.f32.mrf.mxu0
      %v624 = vadd.f32 %v427, %v623
      %v625 = vpop.f32.mrf.mxu0
      %v626 = vadd.f32 %v432, %v625
      %v627 = vpop.f32.mrf.mxu0
      %v628 = vadd.f32 %v432, %v627
      %629 = vmatprep.mubr.bf16.mxu0 0
      %630 = vmatmul.mubr.bf16.gmra.mxu0 %v522
      %v631 = vpop.f32.mrf.mxu0
      %v632 = vadd.f32 %v437, %v631
      %v633 = vpop.f32.mrf.mxu0
      %v634 = vadd.f32 %v437, %v633
      %v635 = vpop.f32.mrf.mxu0
      %v636 = vadd.f32 %v442, %v635
      %v637 = vpop.f32.mrf.mxu0
      %v638 = vadd.f32 %v442, %v637
      %639 = vmatprep.mubr.bf16.mxu0 0
      %640 = vmatmul.mubr.bf16.gmra.mxu0 %v525
      %v641 = vpop.f32.mrf.mxu0
      %v642 = vadd.f32 %v447, %v641
      %v643 = vpop.f32.mrf.mxu0
      %v644 = vadd.f32 %v447, %v643
      %v645 = vpop.f32.mrf.mxu0
      %v646 = vadd.f32 %v452, %v645
      %v647 = vpop.f32.mrf.mxu0
      %v648 = vadd.f32 %v452, %v647
      %649 = vdwg.mxu0
      %v650 = vmax.f32 %v572, 0.0
      %v651 = vmax.f32 %v574, 0.0
      %v652 = vmax.f32 %v576, 0.0
      %v653 = vmax.f32 %v578, 0.0
      %v654 = vmax.f32 %v582, 0.0
      %v655 = vmax.f32 %v584, 0.0
      %v656 = vmax.f32 %v586, 0.0
      %v657 = vmax.f32 %v588, 0.0
      %v658 = vmax.f32 %v592, 0.0
      %v659 = vmax.f32 %v594, 0.0
      %v660 = vmax.f32 %v596, 0.0
      %v661 = vmax.f32 %v598, 0.0
      %v662 = vmax.f32 %v602, 0.0
      %v663 = vmax.f32 %v604, 0.0
      %v664 = vmax.f32 %v606, 0.0
      %v665 = vmax.f32 %v608, 0.0
      %v666 = vmax.f32 %v612, 0.0
      %v667 = vmax.f32 %v614, 0.0
      %v668 = vmax.f32 %v616, 0.0
      %v669 = vmax.f32 %v618, 0.0
      %v670 = vmax.f32 %v622, 0.0
      %v671 = vmax.f32 %v624, 0.0
      %v672 = vmax.f32 %v626, 0.0
      %v673 = vmax.f32 %v628, 0.0
      %v674 = vmax.f32 %v632, 0.0
      %v675 = vmax.f32 %v634, 0.0
      %v676 = vmax.f32 %v636, 0.0
      %v677 = vmax.f32 %v638, 0.0
      %v678 = vmax.f32 %v642, 0.0
      %v679 = vmax.f32 %v644, 0.0
      %v680 = vmax.f32 %v646, 0.0
      %v681 = vmax.f32 %v648, 0.0
      %v682 = vpack.c.bf16 %v652, %v650
      %v683 = vpack.c.bf16 %v653, %v651
      %v684 = vpack.c.bf16 %v656, %v654
      %v685 = vpack.c.bf16 %v657, %v655
      %v686 = vpack.c.bf16 %v660, %v658
      %v687 = vpack.c.bf16 %v661, %v659
      %v688 = vpack.c.bf16 %v664, %v662
      %v689 = vpack.c.bf16 %v665, %v663
      %v690 = vpack.c.bf16 %v668, %v666
      %v691 = vpack.c.bf16 %v669, %v667
      %v692 = vpack.c.bf16 %v672, %v670
      %v693 = vpack.c.bf16 %v673, %v671
      %v694 = vpack.c.bf16 %v676, %v674
      %v695 = vpack.c.bf16 %v677, %v675
      %v696 = vpack.c.bf16 %v680, %v678
      %v697 = vpack.c.bf16 %v681, %v679
      %v698 = vld [vmem:[%s3] sm:$0xf]
      %v699 = vld [vmem:[%s3 + $0x4] sm:$0xf]
      %v700 = vld [vmem:[%s3 + $0x8] sm:$0xf]
      %v701 = vld [vmem:[%s3 + $0xc] sm:$0xf]
      %v702 = vld [vmem:[%s3 + $0x10] sm:$0xf]
      %v703 = vld [vmem:[%s3 + $0x14] sm:$0xf]
      %v704 = vld [vmem:[%s3 + $0x18] sm:$0xf]
      %v705 = vld [vmem:[%s3 + $0x1c] sm:$0xf]
      %v706 = vld [vmem:[%s3 + $0x20] sm:$0xf]
      %v707 = vld [vmem:[%s3 + $0x24] sm:$0xf]
      %v708 = vld [vmem:[%s3 + $0x28] sm:$0xf]
      %v709 = vld [vmem:[%s3 + $0x2c] sm:$0xf]
      %v710 = vld [vmem:[%s3 + $0x30] sm:$0xf]
      %v711 = vld [vmem:[%s3 + $0x34] sm:$0xf]
      %v712 = vld [vmem:[%s3 + $0x38] sm:$0xf]
      %v713 = vld [vmem:[%s3 + $0x3c] sm:$0xf]
      %v714 = vld [vmem:[%s4] sm:$0xff]
      %v715 = vld [vmem:[%s4 + $0x8] sm:$0xff]
      %v716 = vld [vmem:[%s4 + $0x10] sm:$0xff]
      %v717 = vld [vmem:[%s4 + $0x18] sm:$0xff]
      %v718 = vld [vmem:[%s4 + $0x20] sm:$0xff]
      %v719 = vld [vmem:[%s4 + $0x28] sm:$0xff]
      %v720 = vld [vmem:[%s4 + $0x30] sm:$0xff]
      %v721 = vld [vmem:[%s4 + $0x38] sm:$0xff]
      %v722 = vld [vmem:[%s4 + $0x40] sm:$0xff]
      %v723 = vld [vmem:[%s4 + $0x48] sm:$0xff]
      %v724 = vld [vmem:[%s4 + $0x50] sm:$0xff]
      %v725 = vld [vmem:[%s4 + $0x58] sm:$0xff]
      %v726 = vld [vmem:[%s4 + $0x60] sm:$0xff]
      %v727 = vld [vmem:[%s4 + $0x68] sm:$0xff]
      %v728 = vld [vmem:[%s4 + $0x70] sm:$0xff]
      %v729 = vld [vmem:[%s4 + $0x78] sm:$0xff]
      %731 = vset.pattern.permute.xlu0 0
      %732 = vperm.xlu0 %731, %v714
      %v733 = vpop.permute.xlu0 %732
      %736 = vset.pattern.permute.xlu0 0
      %737 = vperm.xlu0 %736, %v715
      %v738 = vpop.permute.xlu0 %737
      %741 = vset.pattern.permute.xlu0 0
      %742 = vperm.xlu0 %741, %v716
      %v743 = vpop.permute.xlu0 %742
      %746 = vset.pattern.permute.xlu0 0
      %747 = vperm.xlu0 %746, %v717
      %v748 = vpop.permute.xlu0 %747
      %751 = vset.pattern.permute.xlu0 0
      %752 = vperm.xlu0 %751, %v718
      %v753 = vpop.permute.xlu0 %752
      %756 = vset.pattern.permute.xlu0 0
      %757 = vperm.xlu0 %756, %v719
      %v758 = vpop.permute.xlu0 %757
      %761 = vset.pattern.permute.xlu0 0
      %762 = vperm.xlu0 %761, %v720
      %v763 = vpop.permute.xlu0 %762
      %766 = vset.pattern.permute.xlu0 0
      %767 = vperm.xlu0 %766, %v721
      %v768 = vpop.permute.xlu0 %767
      %771 = vset.pattern.permute.xlu0 0
      %772 = vperm.xlu0 %771, %v722
      %v773 = vpop.permute.xlu0 %772
      %776 = vset.pattern.permute.xlu0 0
      %777 = vperm.xlu0 %776, %v723
      %v778 = vpop.permute.xlu0 %777
      %781 = vset.pattern.permute.xlu0 0
      %782 = vperm.xlu0 %781, %v724
      %v783 = vpop.permute.xlu0 %782
      %786 = vset.pattern.permute.xlu0 0
      %787 = vperm.xlu0 %786, %v725
      %v788 = vpop.permute.xlu0 %787
      %791 = vset.pattern.permute.xlu0 0
      %792 = vperm.xlu0 %791, %v726
      %v793 = vpop.permute.xlu0 %792
      %796 = vset.pattern.permute.xlu0 0
      %797 = vperm.xlu0 %796, %v727
      %v798 = vpop.permute.xlu0 %797
      %801 = vset.pattern.permute.xlu0 0
      %802 = vperm.xlu0 %801, %v728
      %v803 = vpop.permute.xlu0 %802
      %806 = vset.pattern.permute.xlu0 0
      %807 = vperm.xlu0 %806, %v729
      %v808 = vpop.permute.xlu0 %807
      %v826 = vunpack.c.l.b16 %v698
      %v827 = vunpack.c.l.b16 %v699
      %v828 = vunpack.c.l.b16 %v700
      %v829 = vunpack.c.l.b16 %v701
      %v830 = vunpack.c.l.b16 %v702
      %v831 = vunpack.c.l.b16 %v703
      %v832 = vunpack.c.l.b16 %v704
      %v833 = vunpack.c.l.b16 %v705
      %v834 = vunpack.c.l.b16 %v706
      %v835 = vunpack.c.l.b16 %v707
      %v836 = vunpack.c.l.b16 %v708
      %v837 = vunpack.c.l.b16 %v709
      %v838 = vunpack.c.l.b16 %v710
      %v839 = vunpack.c.l.b16 %v711
      %v840 = vunpack.c.l.b16 %v712
      %v841 = vunpack.c.l.b16 %v713
      %v842 = vpack.c.b16 %v827, %v826
      %v843 = vpack.c.b16 %v829, %v828
      %v844 = vpack.c.b16 %v831, %v830
      %v845 = vpack.c.b16 %v833, %v832
      %v846 = vpack.c.b16 %v835, %v834
      %v847 = vpack.c.b16 %v837, %v836
      %v848 = vpack.c.b16 %v839, %v838
      %v849 = vpack.c.b16 %v841, %v840
      %858 = vmatprep.subr.bf16.mxu0 %v697
      %859 = vmatpush1.bf16.msra.mxu0 %v696
      %860 = vmatprep.subr.bf16.mxu0 %v695
      %861 = vmatpush1.bf16.msra.mxu0 %v694
      %862 = vmatprep.subr.bf16.mxu0 %v693
      %863 = vmatpush1.bf16.msra.mxu0 %v692
      %864 = vmatprep.subr.bf16.mxu0 %v691
      %865 = vmatpush1.bf16.msra.mxu0 %v690
      %866 = vmatprep.subr.bf16.mxu0 %v689
      %867 = vmatpush1.bf16.msra.mxu0 %v688
      %868 = vmatprep.subr.bf16.mxu0 %v687
      %869 = vmatpush1.bf16.msra.mxu0 %v686
      %870 = vmatprep.subr.bf16.mxu0 %v685
      %871 = vmatpush1.bf16.msra.mxu0 %v684
      %872 = vmatprep.subr.bf16.mxu0 %v683
      %873 = vmatpush1.bf16.msra.mxu0 %v682
      %874 = vmatprep.subr.bf16.mxu0 0
      %875 = vmatpush2.bf16.msra.mxu0 0
      %876 = vmatprep.subr.bf16.mxu0 0
      %877 = vmatpush2.bf16.msra.mxu0 0
      %878 = vmatprep.subr.bf16.mxu0 0
      %879 = vmatpush2.bf16.msra.mxu0 0
      %880 = vmatprep.subr.bf16.mxu0 0
      %881 = vmatpush2.bf16.msra.mxu0 0
      %882 = vmatprep.subr.bf16.mxu0 0
      %883 = vmatpush2.bf16.msra.mxu0 0
      %884 = vmatprep.subr.bf16.mxu0 0
      %885 = vmatpush2.bf16.msra.mxu0 0
      %886 = vmatprep.subr.bf16.mxu0 0
      %887 = vmatpush2.bf16.msra.mxu0 0
      %888 = vmatprep.subr.bf16.mxu0 0
      %889 = vmatpush2.bf16.msra.mxu0 0
      %890 = vmatprep.mubr.bf16.mxu0 0
      %891 = vmatmul.mubr.bf16.gmra.mxu0 %v842
      %v892 = vpop.f32.mrf.mxu0
      %v893 = vadd.f32 %v733, %v892
      %v894 = vpop.f32.mrf.mxu0
      %v895 = vadd.f32 %v733, %v894
      %v896 = vpop.f32.mrf.mxu0
      %v897 = vadd.f32 %v738, %v896
      %v898 = vpop.f32.mrf.mxu0
      %v899 = vadd.f32 %v738, %v898
      %900 = vmatprep.mubr.bf16.mxu0 0
      %901 = vmatmul.mubr.bf16.gmra.mxu0 %v843
      %v902 = vpop.f32.mrf.mxu0
      %v903 = vadd.f32 %v743, %v902
      %v904 = vpop.f32.mrf.mxu0
      %v905 = vadd.f32 %v743, %v904
      %v906 = vpop.f32.mrf.mxu0
      %v907 = vadd.f32 %v748, %v906
      %v908 = vpop.f32.mrf.mxu0
      %v909 = vadd.f32 %v748, %v908
      %910 = vmatprep.mubr.bf16.mxu0 0
      %911 = vmatmul.mubr.bf16.gmra.mxu0 %v844
      %v912 = vpop.f32.mrf.mxu0
      %v913 = vadd.f32 %v753, %v912
      %v914 = vpop.f32.mrf.mxu0
      %v915 = vadd.f32 %v753, %v914
      %v916 = vpop.f32.mrf.mxu0
      %v917 = vadd.f32 %v758, %v916
      %v918 = vpop.f32.mrf.mxu0
      %v919 = vadd.f32 %v758, %v918
      %920 = vmatprep.mubr.bf16.mxu0 0
      %921 = vmatmul.mubr.bf16.gmra.mxu0 %v845
      %v922 = vpop.f32.mrf.mxu0
      %v923 = vadd.f32 %v763, %v922
      %v924 = vpop.f32.mrf.mxu0
      %v925 = vadd.f32 %v763, %v924
      %v926 = vpop.f32.mrf.mxu0
      %v927 = vadd.f32 %v768, %v926
      %v928 = vpop.f32.mrf.mxu0
      %v929 = vadd.f32 %v768, %v928
      %930 = vmatprep.mubr.bf16.mxu0 0
      %931 = vmatmul.mubr.bf16.gmra.mxu0 %v846
      %v932 = vpop.f32.mrf.mxu0
      %v933 = vadd.f32 %v773, %v932
      %v934 = vpop.f32.mrf.mxu0
      %v935 = vadd.f32 %v773, %v934
      %v936 = vpop.f32.mrf.mxu0
      %v937 = vadd.f32 %v778, %v936
      %v938 = vpop.f32.mrf.mxu0
      %v939 = vadd.f32 %v778, %v938
      %940 = vmatprep.mubr.bf16.mxu0 0
      %941 = vmatmul.mubr.bf16.gmra.mxu0 %v847
      %v942 = vpop.f32.mrf.mxu0
      %v943 = vadd.f32 %v783, %v942
      %v944 = vpop.f32.mrf.mxu0
      %v945 = vadd.f32 %v783, %v944
      %v946 = vpop.f32.mrf.mxu0
      %v947 = vadd.f32 %v788, %v946
      %v948 = vpop.f32.mrf.mxu0
      %v949 = vadd.f32 %v788, %v948
      %950 = vmatprep.mubr.bf16.mxu0 0
      %951 = vmatmul.mubr.bf16.gmra.mxu0 %v848
      %v952 = vpop.f32.mrf.mxu0
      %v953 = vadd.f32 %v793, %v952
      %v954 = vpop.f32.mrf.mxu0
      %v955 = vadd.f32 %v793, %v954
      %v956 = vpop.f32.mrf.mxu0
      %v957 = vadd.f32 %v798, %v956
      %v958 = vpop.f32.mrf.mxu0
      %v959 = vadd.f32 %v798, %v958
      %960 = vmatprep.mubr.bf16.mxu0 0
      %961 = vmatmul.mubr.bf16.gmra.mxu0 %v849
      %v962 = vpop.f32.mrf.mxu0
      %v963 = vadd.f32 %v803, %v962
      %v964 = vpop.f32.mrf.mxu0
      %v965 = vadd.f32 %v803, %v964
      %v966 = vpop.f32.mrf.mxu0
      %v967 = vadd.f32 %v808, %v966
      %v968 = vpop.f32.mrf.mxu0
      %v969 = vadd.f32 %v808, %v968
      %970 = vdwg.mxu0
      %v971 = vmul.f32 %v893, %v893
      %v972 = vmul.f32 %v895, %v895
      %v973 = vmul.f32 %v897, %v897
      %v974 = vmul.f32 %v899, %v899
      %v975 = vmul.f32 %v903, %v903
      %v976 = vmul.f32 %v905, %v905
      %v977 = vmul.f32 %v907, %v907
      %v978 = vmul.f32 %v909, %v909
      %v979 = vmul.f32 %v913, %v913
      %v980 = vmul.f32 %v915, %v915
      %v981 = vmul.f32 %v917, %v917
      %v982 = vmul.f32 %v919, %v919
      %v983 = vmul.f32 %v923, %v923
      %v984 = vmul.f32 %v925, %v925
      %v985 = vmul.f32 %v927, %v927
      %v986 = vmul.f32 %v929, %v929
      %v987 = vmul.f32 %v933, %v933
      %v988 = vmul.f32 %v935, %v935
      %v989 = vmul.f32 %v937, %v937
      %v990 = vmul.f32 %v939, %v939
      %v991 = vmul.f32 %v943, %v943
      %v992 = vmul.f32 %v945, %v945
      %v993 = vmul.f32 %v947, %v947
      %v994 = vmul.f32 %v949, %v949
      %v995 = vmul.f32 %v953, %v953
      %v996 = vmul.f32 %v955, %v955
      %v997 = vmul.f32 %v957, %v957
      %v998 = vmul.f32 %v959, %v959
      %v999 = vmul.f32 %v963, %v963
      %v1000 = vmul.f32 %v965, %v965
      %v1001 = vmul.f32 %v967, %v967
      %v1002 = vmul.f32 %v969, %v969
      %v1003 = vadd.f32 %v971, %v973
      %v1004 = vadd.f32 %v1003, %v975
      %v1005 = vadd.f32 %v1004, %v977
      %v1006 = vadd.f32 %v1005, %v979
      %v1007 = vadd.f32 %v1006, %v981
      %v1008 = vadd.f32 %v1007, %v983
      %v1009 = vadd.f32 %v1008, %v985
      %v1010 = vadd.f32 %v1009, %v987
      %v1011 = vadd.f32 %v1010, %v989
      %v1012 = vadd.f32 %v1011, %v991
      %v1013 = vadd.f32 %v1012, %v993
      %v1014 = vadd.f32 %v1013, %v995
      %v1015 = vadd.f32 %v1014, %v997
      %v1016 = vadd.f32 %v1015, %v999
      %v1017 = vadd.f32 %v1016, %v1001
      %v1018 = vrot.slane %v1017, 4
      %v1019 = vadd.f32 %v1017, %v1018
      %v1020 = vrot.slane %v1019, 2
      %v1021 = vadd.f32 %v1019, %v1020
      %v1022 = vrot.slane %v1021, 1
      %v1023 = vadd.f32 %v1021, %v1022
      %v1024 = vadd.f32 %v972, %v974
      %v1025 = vadd.f32 %v1024, %v976
      %v1026 = vadd.f32 %v1025, %v978
      %v1027 = vadd.f32 %v1026, %v980
      %v1028 = vadd.f32 %v1027, %v982
      %v1029 = vadd.f32 %v1028, %v984
      %v1030 = vadd.f32 %v1029, %v986
      %v1031 = vadd.f32 %v1030, %v988
      %v1032 = vadd.f32 %v1031, %v990
      %v1033 = vadd.f32 %v1032, %v992
      %v1034 = vadd.f32 %v1033, %v994
      %v1035 = vadd.f32 %v1034, %v996
      %v1036 = vadd.f32 %v1035, %v998
      %v1037 = vadd.f32 %v1036, %v1000
      %v1038 = vadd.f32 %v1037, %v1002
      %v1039 = vrot.slane %v1038, 4
      %v1040 = vadd.f32 %v1038, %v1039
      %v1041 = vrot.slane %v1040, 2
      %v1042 = vadd.f32 %v1040, %v1041
      %v1043 = vrot.slane %v1042, 1
      %v1044 = vadd.f32 %v1042, %v1043
      %v1045 = vadd.f32 %v1023, 1e-12
      %v1046 = vadd.f32 %v1044, 1e-12
      %v1047 = vrsqrt.pop %v1045
      %v1048 = vrsqrt.pop %v1046
      %v1049 = vmul.f32 %v893, %v1047
      %v1050 = vmul.f32 %v895, %v1048
      %v1051 = vmul.f32 %v897, %v1047
      %v1052 = vmul.f32 %v899, %v1048
      %v1053 = vmul.f32 %v903, %v1047
      %v1054 = vmul.f32 %v905, %v1048
      %v1055 = vmul.f32 %v907, %v1047
      %v1056 = vmul.f32 %v909, %v1048
      %v1057 = vmul.f32 %v913, %v1047
      %v1058 = vmul.f32 %v915, %v1048
      %v1059 = vmul.f32 %v917, %v1047
      %v1060 = vmul.f32 %v919, %v1048
      %v1061 = vmul.f32 %v923, %v1047
      %v1062 = vmul.f32 %v925, %v1048
      %v1063 = vmul.f32 %v927, %v1047
      %v1064 = vmul.f32 %v929, %v1048
      %v1065 = vmul.f32 %v933, %v1047
      %v1066 = vmul.f32 %v935, %v1048
      %v1067 = vmul.f32 %v937, %v1047
      %v1068 = vmul.f32 %v939, %v1048
      %v1069 = vmul.f32 %v943, %v1047
      %v1070 = vmul.f32 %v945, %v1048
      %v1071 = vmul.f32 %v947, %v1047
      %v1072 = vmul.f32 %v949, %v1048
      %v1073 = vmul.f32 %v953, %v1047
      %v1074 = vmul.f32 %v955, %v1048
      %v1075 = vmul.f32 %v957, %v1047
      %v1076 = vmul.f32 %v959, %v1048
      %v1077 = vmul.f32 %v963, %v1047
      %v1078 = vmul.f32 %v965, %v1048
      %v1079 = vmul.f32 %v967, %v1047
      %v1080 = vmul.f32 %v969, %v1048
      %v1081 = vpack.c.bf16 %v1051, %v1049
      %v1082 = vpack.c.bf16 %v1052, %v1050
      %v1083 = vpack.c.bf16 %v1055, %v1053
      %v1084 = vpack.c.bf16 %v1056, %v1054
      %v1085 = vpack.c.bf16 %v1059, %v1057
      %v1086 = vpack.c.bf16 %v1060, %v1058
      %v1087 = vpack.c.bf16 %v1063, %v1061
      %v1088 = vpack.c.bf16 %v1064, %v1062
      %v1089 = vpack.c.bf16 %v1067, %v1065
      %v1090 = vpack.c.bf16 %v1068, %v1066
      %v1091 = vpack.c.bf16 %v1071, %v1069
      %v1092 = vpack.c.bf16 %v1072, %v1070
      %v1093 = vpack.c.bf16 %v1075, %v1073
      %v1094 = vpack.c.bf16 %v1076, %v1074
      %v1095 = vpack.c.bf16 %v1079, %v1077
      %v1096 = vpack.c.bf16 %v1080, %v1078
      %v1097 = vld [vmem:[%s5] sm:$0xf]
      %v1098 = vld [vmem:[%s6] sm:$0xff]
      %1100 = vset.pattern.permute.xlu0 0
      %1101 = vperm.xlu0 %1100, %v1098
      %v1102 = vpop.permute.xlu0 %1101
      %1104 = vmatprep.subr.bf16.mxu0 %v1096
      %1105 = vmatpush1.bf16.msra.mxu0 %v1095
      %1106 = vmatprep.subr.bf16.mxu0 %v1094
      %1107 = vmatpush1.bf16.msra.mxu0 %v1093
      %1108 = vmatprep.subr.bf16.mxu0 %v1092
      %1109 = vmatpush1.bf16.msra.mxu0 %v1091
      %1110 = vmatprep.subr.bf16.mxu0 %v1090
      %1111 = vmatpush1.bf16.msra.mxu0 %v1089
      %1112 = vmatprep.subr.bf16.mxu0 %v1088
      %1113 = vmatpush1.bf16.msra.mxu0 %v1087
      %1114 = vmatprep.subr.bf16.mxu0 %v1086
      %1115 = vmatpush1.bf16.msra.mxu0 %v1085
      %1116 = vmatprep.subr.bf16.mxu0 %v1084
      %1117 = vmatpush1.bf16.msra.mxu0 %v1083
      %1118 = vmatprep.subr.bf16.mxu0 %v1082
      %1119 = vmatpush1.bf16.msra.mxu0 %v1081
      %1120 = vmatprep.subr.bf16.mxu0 0
      %1121 = vmatpush2.bf16.msra.mxu0 0
      %1122 = vmatprep.subr.bf16.mxu0 0
      %1123 = vmatpush2.bf16.msra.mxu0 0
      %1124 = vmatprep.subr.bf16.mxu0 0
      %1125 = vmatpush2.bf16.msra.mxu0 0
      %1126 = vmatprep.subr.bf16.mxu0 0
      %1127 = vmatpush2.bf16.msra.mxu0 0
      %1128 = vmatprep.subr.bf16.mxu0 0
      %1129 = vmatpush2.bf16.msra.mxu0 0
      %1130 = vmatprep.subr.bf16.mxu0 0
      %1131 = vmatpush2.bf16.msra.mxu0 0
      %1132 = vmatprep.subr.bf16.mxu0 0
      %1133 = vmatpush2.bf16.msra.mxu0 0
      %1134 = vmatprep.subr.bf16.mxu0 0
      %1135 = vmatpush2.bf16.msra.mxu0 0
      %1136 = vmatprep.mubr.bf16.mxu0 0
      %1137 = vmatmul.mubr.bf16.gmra.mxu0 %v1097
      %v1138 = vpop.f32.mrf.mxu0
      %v1139 = vadd.f32 %v1102, %v1138
      %v1140 = vpop.f32.mrf.mxu0
      %v1141 = vadd.f32 %v1102, %v1140
      %v1142 = vpop.f32.mrf.mxu0
      %v1143 = vpop.f32.mrf.mxu0
      %1144 = vdwg.mxu0
      %v1145 = vrot.slane %v1139, 4
      %v1146 = vmax.f32 %v1139, %v1145
      %v1147 = vrot.slane %v1146, 2
      %v1148 = vmax.f32 %v1146, %v1147
      %v1149 = vrot.slane %v1148, 1
      %v1150 = vmax.f32 %v1148, %v1149
      %v1151 = vrot.slane %v1141, 4
      %v1152 = vmax.f32 %v1141, %v1151
      %v1153 = vrot.slane %v1152, 2
      %v1154 = vmax.f32 %v1152, %v1153
      %v1155 = vrot.slane %v1154, 1
      %v1156 = vmax.f32 %v1154, %v1155
      %v1157 = vsub.f32 %v1139, %v1150
      %v1158 = vsub.f32 %v1141, %v1156
      %v1159 = vmul.f32 %v1157, 1.442695
      %v1160 = vpow.pop %v1159
      %v1161 = vmul.f32 %v1158, 1.442695
      %v1162 = vpow.pop %v1161
      %v1163 = vrot.slane %v1160, 4
      %v1164 = vadd.f32 %v1160, %v1163
      %v1165 = vrot.slane %v1164, 2
      %v1166 = vadd.f32 %v1164, %v1165
      %v1167 = vrot.slane %v1166, 1
      %v1168 = vadd.f32 %v1166, %v1167
      %v1169 = vrot.slane %v1162, 4
      %v1170 = vadd.f32 %v1162, %v1169
      %v1171 = vrot.slane %v1170, 2
      %v1172 = vadd.f32 %v1170, %v1171
      %v1173 = vrot.slane %v1172, 1
      %v1174 = vadd.f32 %v1172, %v1173
      %v1175 = vrcp.pop %v1168
      %v1176 = vrcp.pop %v1174
      %v1177 = vmul.f32 %v1160, %v1175
      %v1178 = vmul.f32 %v1162, %v1176
      %v1179 = vld [vmem:[#allocation2] sm:$0xff]
      %v1180 = vpack.c.bf16 %v1177, %v1177
      %v1181 = vpack.c.bf16 %v1178, %v1178
      %1182 = vmatprep.subr.bf16.mxu0 %v1096
      %1183 = vmatpush1.bf16.xpose.msra.mxu0 %v1095
      %1184 = vmatprep.subr.bf16.mxu0 %v1094
      %1185 = vmatpush1.bf16.xpose.msra.mxu0 %v1093
      %1186 = vmatprep.subr.bf16.mxu0 %v1092
      %1187 = vmatpush1.bf16.xpose.msra.mxu0 %v1091
      %1188 = vmatprep.subr.bf16.mxu0 %v1090
      %1189 = vmatpush1.bf16.xpose.msra.mxu0 %v1089
      %1190 = vmatprep.subr.bf16.mxu0 %v1088
      %1191 = vmatpush1.bf16.xpose.msra.mxu0 %v1087
      %1192 = vmatprep.subr.bf16.mxu0 %v1086
      %1193 = vmatpush1.bf16.xpose.msra.mxu0 %v1085
      %1194 = vmatprep.subr.bf16.mxu0 %v1084
      %1195 = vmatpush1.bf16.xpose.msra.mxu0 %v1083
      %1196 = vmatprep.subr.bf16.mxu0 %v1082
      %1197 = vmatpush1.bf16.xpose.msra.mxu0 %v1081
      %1198 = vmatprep.subr.bf16.mxu0 0
      %1199 = vmatpush2.bf16.xpose.msra.mxu0 0
      %1200 = vmatprep.subr.bf16.mxu0 0
      %1201 = vmatpush2.bf16.xpose.msra.mxu0 0
      %1202 = vmatprep.subr.bf16.mxu0 0
      %1203 = vmatpush2.bf16.xpose.msra.mxu0 0
      %1204 = vmatprep.subr.bf16.mxu0 0
      %1205 = vmatpush2.bf16.xpose.msra.mxu0 0
      %1206 = vmatprep.subr.bf16.mxu0 0
      %1207 = vmatpush2.bf16.xpose.msra.mxu0 0
      %1208 = vmatprep.subr.bf16.mxu0 0
      %1209 = vmatpush2.bf16.xpose.msra.mxu0 0
      %1210 = vmatprep.subr.bf16.mxu0 0
      %1211 = vmatpush2.bf16.xpose.msra.mxu0 0
      %1212 = vmatprep.subr.bf16.mxu0 0
      %1213 = vmatpush2.bf16.xpose.msra.mxu0 0
      %1214 = vmatprep.mubr.bf16.mxu0 %v1181
      %1215 = vmatmul.mubr.bf16.gmra.mxu0 %v1180
      %v1216 = vpop.f32.mrf.mxu0
      %v1217 = vadd.f32 0.0, %v1216
      %v1218 = vpop.f32.mrf.mxu0
      %v1219 = vpop.f32.mrf.mxu0
      %v1220 = vpop.f32.mrf.mxu0
      %1221 = vdwg.mxu0
      %v1222 = vadd.f32 %v1179, %v1217
      %1223 = vst [vmem:[#allocation2] sm:$0xff] %v1222
      %v1224 = vld [vmem:[#allocation3] sm:$0xff]
      %v1225 = vadd.f32 %v1177, %v1178
      %1226 = vadd.xlane.f32.xlu0 %v1225
      %v1227 = vpop.xlane.xlu0 %1226
      %v1228 = vadd.f32 %v1224, %v1227
      %vm1229 = vcmask 7168
      %1230 = vst.msk [vmem:[#allocation3] sm:$0xff] %vm1229, %v1228
      // Predicated region
      $region57: #{bevplace_forward.1} parent=51 // pred_check
        %p1231 = pneg %p333
      $region58: #{bevplace_forward.1} parent=51 // pred_check_branch
        %1233 = sbr.rel (%p1231) target = $region60
      $region59: #{bevplace_forward.1} parent=51 // pred_region
        %v1234 = vld [vmem:[#allocation2] sm:$0xff]
        %v1235 = vld [vmem:[%s7] sm:$0xff]
        %v1236 = vld [vmem:[#allocation3] sm:$0xff]
        %1238 = vset.pattern.permute.xlu0 0
        %1239 = vperm.xlu0 %1238, %v1236
        %v1240 = vpop.permute.xlu0 %1239
        %v1242 = vmul.f32 %v1235, %v1240
        %v1243 = vsub.f32 %v1234, %v1242
        %v1244 = vmul.f32 %v1243, %v1243
        %1245 = vadd.xlane.f32.xlu0 %v1244
        %v1246 = vpop.xlane.xlu0 %1245
        %v1247 = vadd.f32 %v1246, 1e-12
        %v1248 = vrsqrt.pop %v1247
        %v1249 = vmul.f32 %v1243, %v1248
        %v1250 = vmul.f32 %v1249, %v1249
        %1251 = vadd.xlane.f32.xlu0 %v1250
        %v1252 = vpop.xlane.xlu0 %1251
        %v1253 = vrot.slane %v1252, 4
        %v1254 = vadd.f32 %v1252, %v1253
        %v1255 = vrot.slane %v1254, 2
        %v1256 = vadd.f32 %v1254, %v1255
        %v1257 = vrot.slane %v1256, 1
        %v1258 = vadd.f32 %v1256, %v1257
        %s1259 = vtos %v1258
        %v1260 = vstv %s1259
        %v1261 = vadd.f32 %v1260, 1e-12
        %v1262 = vrsqrt.pop %v1261
        %v1263 = vmul.f32 %v1249, %v1262
        %1264 = vst [vmem:[%s331] sm:$0xff] %v1263
      $region60: #{bevplace_forward.1} parent=51 // pred_fallthru
        _
      %p1265 = scmp.lt.s32.totalorder %s23, 1
      %s1266 = scalar_select %p1265, %s23, 1
      %s1267 = smul.addr %s1266, 8
      %s1268 = scalar_lea.vmem %s8, %s1267
      // Predicated region
      $region61: #{bevplace_forward.1} parent=51 // pred_check
        %p1269 = pneg %p224
      $region62: #{bevplace_forward.1} parent=51 // pred_check_branch
        %1271 = sbr.rel (%p1269) target = $region64
      $region63: #{bevplace_forward.1} parent=51 // pred_region
        _
      $region64: #{bevplace_forward.1} parent=51 // pred_fallthru
        _
    $region52: #{bevplace_forward.1} parent=5 // pred_fallthru
      _
    %p1272 = scmp.le.s32.totalorder 2, %s14
    // Predicated region
    $region65: #{bevplace_forward.1} parent=5 // pred_check
      %p1273 = pneg %p1272
    $region66: #{bevplace_forward.1} parent=5 // pred_check_branch
      %1275 = sbr.rel (%p1273) target = $region68
    $region67: #{bevplace_forward.1} parent=5 // pred_region
      %s1276 = ssub.s32 %s14, 2
      // Predicated region
      $region69: #{bevplace_forward.1} parent=67 // pred_check
        %p1277 = pneg %p230
      $region70: #{bevplace_forward.1} parent=67 // pred_check_branch
        %1279 = sbr.rel (%p1277) target = $region72
      $region71: #{bevplace_forward.1} parent=67 // pred_region
        %p1280 = scmp.lt.s32.totalorder %s25, 1
        %s1281 = scalar_select %p1280, %s25, 1
        %s1282 = smul.addr %s1281, 8
        %s1283 = scalar_lea.vmem %s8, %s1282
      $region72: #{bevplace_forward.1} parent=67 // pred_fallthru
        _
    $region68: #{bevplace_forward.1} parent=5 // pred_fallthru
      _
  $region6: #{bevplace_forward.1} parent=0 // loop_footer
    %s18 = sadd.s32 1, %s14
  $region7: #{bevplace_forward.1} parent=0 // loop_footer_branch
    %13 = sbr.rel target = $region3
  $region8: #{bevplace_forward.1} parent=0 // loop_exit
    _

</llo_original>
